<compile_context>
chip_gen: v5e
topology: v5e:2x2
jax: 0.10.0
libtpu: 0.0.40
codegen_flags: <defaults>
</compile_context>

<pallas_src>
import math
import functools

import jax
import jax.numpy as jnp
from jax import lax
from jax.experimental import pallas as pl
from jax.experimental.pallas import tpu as pltpu


# ----------------------------- small helpers -------------------------------

def _layer_norm(x, gamma, beta, eps=1e-5):
    # PyTorch nn.LayerNorm: biased variance, eps inside the sqrt.
    mean = jnp.mean(x, axis=-1, keepdims=True)
    var = jnp.mean((x - mean) ** 2, axis=-1, keepdims=True)
    return (x - mean) * lax.rsqrt(var + eps) * gamma + beta


def _gelu_exact(x):
    # nn.GELU() default = exact erf formulation.
    return 0.5 * x * (1.0 + lax.erf(x * (1.0 / math.sqrt(2.0))))


@functools.lru_cache(maxsize=1)
def _device_kind():
    try:
        return jax.devices()[0].device_kind.lower()
    except Exception:
        return ""


@functools.lru_cache(maxsize=1)
def _physical_vmem_bytes():
    try:
        return int(pltpu.get_tpu_info().vmem_capacity_bytes)
    except Exception:
        return 128 * 1024 * 1024   # v5e/v6e default; v7x handled by the cap below


def _vmem_limit(working_set_bytes):
    # Size the scoped VMEM limit from the working set, with headroom for compiler
    # scratch / pipelining, capped well under the physical VMEM of the generation.
    est = int(working_set_bytes * 1.5) + (8 << 20)
    hi = min(96 << 20, (_physical_vmem_bytes() * 3) // 4)
    return int(max(32 << 20, min(est, hi)))


def _pick_seq_tile(S):
    # v6e MXU is 2x256^2: Tq=256 fills it better and amortizes per-step overhead.
    # Keep 128 on v5e (4x128^2 MXU) and on v7x (64 MiB VMEM, weights double-buffered).
    if S % 256 == 0 and "v6" in _device_kind():
        return 256
    if S % 128 == 0:
        return 128
    return S


def _pick_kv_tile(S):
    for t in (512, 256, 128):
        if S % t == 0:
            return t
    return S


# ------------------------------ kernel A: K/V -------------------------------

def kv_projection_kernel(x_ref, wkv_ref, bkv_ref, k_out_ref, v_out_ref,
                         *, num_heads, head_dim):
    """K/V projection for one (batch, seq-tile): [Ts,H] @ [H,2H] -> heads layout."""
    H = num_heads * head_dim
    x = x_ref[0]                                                    # [Ts, H] bf16
    kv = jnp.dot(x, wkv_ref[...],
                 preferred_element_type=jnp.float32) + bkv_ref[0]   # [Ts, 2H] f32

    def to_heads(z):                                                # [Ts,H] -> [nh,Ts,hd]
        z = z.astype(jnp.bfloat16)                                  # cast before relayout
        return z.reshape(z.shape[0], num_heads, head_dim).transpose(1, 0, 2)

    k_out_ref[0] = to_heads(kv[:, :H])
    v_out_ref[0] = to_heads(kv[:, H:])


# ------------------------- kernel B: attention + FFN -------------------------

def attn_ffn_kernel(x_ref, kh_ref, vh_ref,
                    wq_ref, bq_ref,
                    wo_ref, bo_ref, ln1_g_ref, ln1_b_ref,
                    wi_ref, bi_ref, wd_ref, bd_ref, ln2_g_ref, ln2_b_ref,
                    out_ref,
                    *, num_heads, head_dim, tile_q, tile_k, num_k_tiles):
    """Attention + output proj + LN + GELU FFN + LN for one (batch, query-tile)."""
    H = num_heads * head_dim

    x_bf = x_ref[0]                                                 # [Tq, H] bf16
    x_f32 = x_bf.astype(jnp.float32)

    # --- Q from the query tile only ---
    q = jnp.dot(x_bf, wq_ref[...],
                preferred_element_type=jnp.float32) + bq_ref[0]     # [Tq, H] f32
    qh = (q.astype(jnp.bfloat16)                                    # cast before relayout
          .reshape(tile_q, num_heads, head_dim).transpose(1, 0, 2)) # [nh, Tq, hd]

    scale = 1.0 / math.sqrt(head_dim)

    # --- flash-style attention over K/V tiles with online softmax ---
    def kv_step(kt, carry):
        m, l, acc = carry
        if num_k_tiles == 1:
            kh_t = kh_ref[0]                                        # [nh, S, hd] bf16
            vh_t = vh_ref[0]
        else:
            k_off = pl.multiple_of(kt * tile_k, tile_k)
            kh_t = kh_ref[0, :, pl.ds(k_off, tile_k), :]            # [nh, Tk, hd] bf16
            vh_t = vh_ref[0, :, pl.ds(k_off, tile_k), :]
        s = jnp.einsum('hqd,hkd->hqk', qh, kh_t,
                       preferred_element_type=jnp.float32) * scale  # [nh, Tq, Tk] f32
        m_new = jnp.maximum(m, jnp.max(s, axis=-1, keepdims=True))
        alpha = jnp.exp(m - m_new)
        p = jnp.exp(s - m_new)
        l_new = alpha * l + jnp.sum(p, axis=-1, keepdims=True)
        acc_new = alpha * acc + jnp.einsum('hqk,hkd->hqd',
                                           p.astype(jnp.bfloat16), vh_t,
                                           preferred_element_type=jnp.float32)
        return m_new, l_new, acc_new

    m0 = jnp.full((num_heads, tile_q, 1), -jnp.inf, jnp.float32)
    l0 = jnp.zeros((num_heads, tile_q, 1), jnp.float32)
    acc0 = jnp.zeros((num_heads, tile_q, head_dim), jnp.float32)
    if num_k_tiles == 1:
        m, l, acc = kv_step(0, (m0, l0, acc0))
    else:
        m, l, acc = lax.fori_loop(0, num_k_tiles, kv_step, (m0, l0, acc0),
                                  unroll=num_k_tiles <= 4)

    ctx = acc * pl.reciprocal(l, approx=True)                       # [nh, Tq, hd] f32
    ctx = (ctx.astype(jnp.bfloat16)                                 # cast before relayout
           .transpose(1, 0, 2).reshape(tile_q, H))                  # [Tq, H] bf16

    # --- attention output projection + residual + LayerNorm ---
    attn = jnp.dot(ctx, wo_ref[...],
                   preferred_element_type=jnp.float32) + bo_ref[0]
    h1 = _layer_norm(attn + x_f32, ln1_g_ref[0], ln1_b_ref[0])

    # --- feed forward ---
    inter = _gelu_exact(
        jnp.dot(h1.astype(jnp.bfloat16), wi_ref[...],
                preferred_element_type=jnp.float32) + bi_ref[0])
    ff = jnp.dot(inter.astype(jnp.bfloat16), wd_ref[...],
                 preferred_element_type=jnp.float32) + bd_ref[0]

    # Second residual adds the *layer input*, exactly as the PyTorch reference does
    # (TransformerLayer.forward: layer_norm_output(output + hidden_states)).
    out_ref[0] = _layer_norm(ff + x_f32, ln2_g_ref[0],
                             ln2_b_ref[0]).astype(out_ref.dtype)


# ------------------------------ layer wrapper -------------------------------

def run_transformer_layer(x, p, num_heads):
    """One TransformerLayer. x: [B, S, H] bf16. Returns [B, S, H] bf16."""
    B, S, H = x.shape
    I = p["wi"].shape[1]
    nh = num_heads
    assert H % nh == 0
    hd = H // nh

    tile_s = _pick_seq_tile(S)     # seq tile for both the K/V projection and queries
    tile_k = _pick_kv_tile(S)
    num_s_tiles = S // tile_s
    num_k_tiles = S // tile_k

    bf16, f32 = 2, 4
    const = lambda shp: pl.BlockSpec(shp, lambda b, t: (0, 0))

    # ---- kernel A: K/V projection into heads-major layout ----
    kv_ws = ((H * 2 * H) * bf16 * 2                    # Wkv (double-buffered)
             + tile_s * H * bf16 * 2                   # x tile
             + 2 * nh * tile_s * hd * bf16 * 2         # K/V output tiles
             + tile_s * 2 * H * f32)                   # f32 projection intermediate
    kv_shape = jax.ShapeDtypeStruct((B, nh, S, hd), jnp.bfloat16)
    k_heads, v_heads = pl.pallas_call(
        functools.partial(kv_projection_kernel, num_heads=nh, head_dim=hd),
        out_shape=(kv_shape, kv_shape),
        grid_spec=pltpu.PrefetchScalarGridSpec(
            num_scalar_prefetch=0,
            grid=(B, num_s_tiles),
            in_specs=[
                pl.BlockSpec((1, tile_s, H), lambda b, t: (b, t, 0)),   # x
                const((H, 2 * H)), const((1, 2 * H)),                   # Wkv, bkv
            ],
            out_specs=[
                pl.BlockSpec((1, nh, tile_s, hd), lambda b, t: (b, 0, t, 0)),
                pl.BlockSpec((1, nh, tile_s, hd), lambda b, t: (b, 0, t, 0)),
            ],
        ),
        compiler_params=pltpu.CompilerParams(
            dimension_semantics=("parallel", "parallel"),
            vmem_limit_bytes=_vmem_limit(kv_ws)),
    )(x, p["wkv"], p["bkv"])

    # ---- kernel B: attention + output proj + LN + FFN + LN ----
    attn_ws = ((2 * H * H + 2 * H * I) * bf16 * 2      # Wq, Wo, Wi, Wd (double-buffered)
               + 2 * nh * S * hd * bf16 * 2            # K/V heads blocks
               + 2 * tile_s * H * bf16 * 2             # x tile + out tile
               + 3 * nh * tile_s * tile_k * f32        # scores / probs working set
               + tile_s * I * f32                      # FFN intermediate
               + 4 * tile_s * H * f32)                 # q / attn / h1 / ff
    kernel = functools.partial(attn_ffn_kernel, num_heads=nh, head_dim=hd,
                               tile_q=tile_s, tile_k=tile_k, num_k_tiles=num_k_tiles)
    return pl.pallas_call(
        kernel,
        out_shape=jax.ShapeDtypeStruct((B, S, H), jnp.bfloat16),
        grid_spec=pltpu.PrefetchScalarGridSpec(
            num_scalar_prefetch=0,
            grid=(B, num_s_tiles),
            in_specs=[
                pl.BlockSpec((1, tile_s, H), lambda b, t: (b, t, 0)),     # x query tile
                pl.BlockSpec((1, nh, S, hd), lambda b, t: (b, 0, 0, 0)),  # K heads
                pl.BlockSpec((1, nh, S, hd), lambda b, t: (b, 0, 0, 0)),  # V heads
                const((H, H)), const((1, H)),                             # Wq, bq
                const((H, H)), const((1, H)),                             # Wo, bo
                const((1, H)), const((1, H)),                             # ln1 gamma, beta
                const((H, I)), const((1, I)),                             # Wi, bi
                const((I, H)), const((1, H)),                             # Wd, bd
                const((1, H)), const((1, H)),                             # ln2 gamma, beta
            ],
            out_specs=pl.BlockSpec((1, tile_s, H), lambda b, t: (b, t, 0)),
        ),
        compiler_params=pltpu.CompilerParams(
            dimension_semantics=("parallel", "parallel"),
            vmem_limit_bytes=_vmem_limit(attn_ws)),
    )(x, k_heads, v_heads,
      p["wq"], p["bq"], p["wo"], p["bo"], p["ln1_g"], p["ln1_b"],
      p["wi"], p["bi"], p["wd"], p["bd"], p["ln2_g"], p["ln2_b"])


# --------------------------- parameter construction -------------------------

def init_transformer_params(key, num_layers, hidden_size, intermediate_size):
    H, I = hidden_size, intermediate_size
    layers = []
    for _ in range(num_layers):
        keys = jax.random.split(key, 7)
        key = keys[0]

        def w(k, shape):
            # bf16 weights stored pre-transposed as [in, out]: y = x @ W + b.
            return (0.02 * jax.random.normal(k, shape, jnp.float32)).astype(jnp.bfloat16)

        wq, wk, wv = w(keys[1], (H, H)), w(keys[2], (H, H)), w(keys[3], (H, H))
        layers.append({
            "wq": wq, "bq": jnp.zeros((1, H), jnp.float32),
            "wkv": jnp.concatenate([wk, wv], axis=1),                 # [H, 2H] bf16
            "bkv": jnp.zeros((1, 2 * H), jnp.float32),
            "wo": w(keys[4], (H, H)), "bo": jnp.zeros((1, H), jnp.float32),
            "ln1_g": jnp.ones((1, H), jnp.float32),
            "ln1_b": jnp.zeros((1, H), jnp.float32),
            "wi": w(keys[5], (H, I)), "bi": jnp.zeros((1, I), jnp.float32),
            "wd": w(keys[6], (I, H)), "bd": jnp.zeros((1, H), jnp.float32),
            "ln2_g": jnp.ones((1, H), jnp.float32),
            "ln2_b": jnp.zeros((1, H), jnp.float32),
        })
    return layers


def transformer_forward(hidden_states, layer_params, num_heads, reduction="top"):
    # Activations live in bf16 in HBM (halves activation DMA); f32 math inside kernels.
    h = hidden_states.astype(jnp.bfloat16)
    for p in layer_params:
        h = run_transformer_layer(h, p, num_heads)
    if reduction == "top":
        return h[:, 0, :].astype(jnp.float32)
    elif reduction == "mean":
        return jnp.mean(h.astype(jnp.float32), axis=1)
    elif reduction is None:
        return (jnp.mean(h.astype(jnp.float32), axis=1), h.astype(jnp.float32))
    else:
        raise RuntimeError(f"cannot recognize reduction: {reduction}")


# ---------------------------------- main ------------------------------------

if __name__ == "__main__":
    num_layers = 2
    hidden_size = 32                         # NOTE: real configs should use H % 128 == 0
    intermediate_size = 4 * hidden_size      # 128
    num_attention_heads = 4
    B, S = 2, 8

    key = jax.random.PRNGKey(0)
    k_x, k_p = jax.random.split(key)
    hidden_states = jax.random.normal(k_x, (B, S, hidden_size), jnp.float32)

    params = init_transformer_params(k_p, num_layers, hidden_size,
                                     intermediate_size)

    out = transformer_forward(hidden_states, params, num_attention_heads,
                              reduction="top")
    out = jax.block_until_ready(out)
    assert out.shape == (B, hidden_size), out.shape
    print("KERNEL_OK")
</pallas_src>

<mosaic_0001>
module attributes {stable_mosaic.version = 11 : i64} {
  func.func @kv_projection_kernel(%arg0: i32, %arg1: i32, %arg2: memref<1x8x32xbf16, #tpu.memory_space<vmem>>, %arg3: memref<32x64xbf16, #tpu.memory_space<vmem>>, %arg4: memref<1x64xf32, #tpu.memory_space<vmem>>, %arg5: memref<1x4x8x8xbf16, #tpu.memory_space<vmem>>, %arg6: memref<1x4x8x8xbf16, #tpu.memory_space<vmem>>) attributes {dimension_semantics = [#tpu.dimension_semantics<parallel>, #tpu.dimension_semantics<parallel>], iteration_bounds = array<i64: 2, 1>, scalar_prefetch = 0 : i64, scratch_operands = 0 : i64, tpu.core_type = #tpu.core_type<tc>, window_params = [{transform_indices = @transform_0, window_bounds = array<i64: 1, 8, 32>}, {pipeline_mode = #tpu.pipeline_mode<synchronous>, transform_indices = @transform_1, window_bounds = array<i64: 32, 64>}, {pipeline_mode = #tpu.pipeline_mode<synchronous>, transform_indices = @transform_2, window_bounds = array<i64: 1, 64>}, {transform_indices = @transform_3, window_bounds = array<i64: 1, 4, 8, 8>}, {transform_indices = @transform_4, window_bounds = array<i64: 1, 4, 8, 8>}]} {
    %c0 = arith.constant 0 : index
    %c0_0 = arith.constant 0 : index
    %c0_1 = arith.constant 0 : index
    %0 = vector.load %arg2[%c0, %c0_0, %c0_1] : memref<1x8x32xbf16, #tpu.memory_space<vmem>>, vector<1x8x32xbf16>
    %1 = vector.shape_cast %0 : vector<1x8x32xbf16> to vector<8x32xbf16>
    %c0_2 = arith.constant 0 : index
    %c0_3 = arith.constant 0 : index
    %2 = vector.load %arg3[%c0_2, %c0_3] : memref<32x64xbf16, #tpu.memory_space<vmem>>, vector<32x64xbf16>
    %cst = arith.constant dense<0.000000e+00> : vector<8x64xf32>
    %3 = tpu.matmul %1, %2, %cst {dimension_numbers = #tpu.dot_dimension_numbers<[1], [0], [0], [1], [0, 0, 1, 1], [], []>} : vector<8x32xbf16>, vector<32x64xbf16>, vector<8x64xf32> -> vector<8x64xf32>
    %c0_4 = arith.constant 0 : index
    %c0_5 = arith.constant 0 : index
    %4 = vector.load %arg4[%c0_4, %c0_5] : memref<1x64xf32, #tpu.memory_space<vmem>>, vector<1x64xf32>
    %5 = vector.shape_cast %4 : vector<1x64xf32> to vector<64xf32>
    %6 = vector.shape_cast %5 : vector<64xf32> to vector<1x64xf32>
    %7 = vector.broadcast %6 : vector<1x64xf32> to vector<8x64xf32>
    %8 = arith.addf %3, %7 : vector<8x64xf32>
    %9 = vector.extract_strided_slice %8 {offsets = [0, 0], sizes = [8, 32], strides = [1, 1]} : vector<8x64xf32> to vector<8x32xf32>
    %10 = arith.truncf %9 : vector<8x32xf32> to vector<8x32xbf16>
    %11 = vector.shape_cast %10 : vector<8x32xbf16> to vector<8x4x8xbf16>
    %12 = tpu.transpose %11, [1, 0, 2] : vector<8x4x8xbf16> -> vector<4x8x8xbf16>
    %c0_6 = arith.constant 0 : index
    %c0_7 = arith.constant 0 : index
    %c0_8 = arith.constant 0 : index
    %c0_9 = arith.constant 0 : index
    %13 = vector.load %arg5[%c0_6, %c0_7, %c0_8, %c0_9] : memref<1x4x8x8xbf16, #tpu.memory_space<vmem>>, vector<1x4x8x8xbf16>
    %14 = vector.shape_cast %13 : vector<1x4x8x8xbf16> to vector<4x8x8xbf16>
    %15 = vector.shape_cast %12 : vector<4x8x8xbf16> to vector<1x4x8x8xbf16>
    tpu.vector_store %arg5[%c0_6, %c0_7, %c0_8, %c0_9], %15 {strides = array<i32>} : memref<1x4x8x8xbf16, #tpu.memory_space<vmem>>, vector<1x4x8x8xbf16>,
    %16 = vector.extract_strided_slice %8 {offsets = [0, 32], sizes = [8, 32], strides = [1, 1]} : vector<8x64xf32> to vector<8x32xf32>
    %17 = arith.truncf %16 : vector<8x32xf32> to vector<8x32xbf16>
    %18 = vector.shape_cast %17 : vector<8x32xbf16> to vector<8x4x8xbf16>
    %19 = tpu.transpose %18, [1, 0, 2] : vector<8x4x8xbf16> -> vector<4x8x8xbf16>
    %c0_10 = arith.constant 0 : index
    %c0_11 = arith.constant 0 : index
    %c0_12 = arith.constant 0 : index
    %c0_13 = arith.constant 0 : index
    %20 = vector.load %arg6[%c0_10, %c0_11, %c0_12, %c0_13] : memref<1x4x8x8xbf16, #tpu.memory_space<vmem>>, vector<1x4x8x8xbf16>
    %21 = vector.shape_cast %20 : vector<1x4x8x8xbf16> to vector<4x8x8xbf16>
    %22 = vector.shape_cast %19 : vector<4x8x8xbf16> to vector<1x4x8x8xbf16>
    tpu.vector_store %arg6[%c0_10, %c0_11, %c0_12, %c0_13], %22 {strides = array<i32>} : memref<1x4x8x8xbf16, #tpu.memory_space<vmem>>, vector<1x4x8x8xbf16>,
    return
  }
  func.func @transform_0(%arg0: i32, %arg1: i32) -> (i32, i32, i32) {
    %c0_i32 = arith.constant 0 : i32
    %c0_i32_0 = arith.constant 0 : i32
    return %arg0, %arg1, %c0_i32 : i32, i32, i32
  }
  func.func @transform_1(%arg0: i32, %arg1: i32) -> (i32, i32) {
    %c0_i32 = arith.constant 0 : i32
    %c0_i32_0 = arith.constant 0 : i32
    %c0_i32_1 = arith.constant 0 : i32
    return %c0_i32, %c0_i32_0 : i32, i32
  }
  func.func @transform_2(%arg0: i32, %arg1: i32) -> (i32, i32) {
    %c0_i32 = arith.constant 0 : i32
    %c0_i32_0 = arith.constant 0 : i32
    %c0_i32_1 = arith.constant 0 : i32
    return %c0_i32, %c0_i32_0 : i32, i32
  }
  func.func @transform_3(%arg0: i32, %arg1: i32) -> (i32, i32, i32, i32) {
    %c0_i32 = arith.constant 0 : i32
    %c0_i32_0 = arith.constant 0 : i32
    %c0_i32_1 = arith.constant 0 : i32
    return %arg0, %c0_i32, %arg1, %c0_i32_0 : i32, i32, i32, i32
  }
  func.func @transform_4(%arg0: i32, %arg1: i32) -> (i32, i32, i32, i32) {
    %c0_i32 = arith.constant 0 : i32
    %c0_i32_0 = arith.constant 0 : i32
    %c0_i32_1 = arith.constant 0 : i32
    return %arg0, %c0_i32, %arg1, %c0_i32_0 : i32, i32, i32, i32
  }
}

</mosaic_0001>

<llo_original>
// kernel: tpu_custom_call.1
$region0: #{tpu_custom_call.1}
  #allocation0 [shape = 'u32[]', space=smem, size = 0x4, offset = 0x4, fixed_abs, tag = 'smem constant byte address 0x4 - core index']
  #allocation1 [shape = 'u32[72,128]{1,0:T(1,128)}', space=vmem, size = 0x9000, scoped, tag = 'internal scratch']
  %s0 = inlined_call_operand.hbm [shape: bf16[2,8,32], index: 0, kind: input, shape index: {}]
  %s1 = inlined_call_operand.hbm [shape: bf16[32,64], index: 1, kind: input, shape index: {}]
  %s2 = inlined_call_operand.vmem [shape: f32[1,64], index: 2, kind: input, shape index: {}]
  %s3 = inlined_call_operand.hbm [shape: bf16[2,4,8,8], index: 3, kind: output, shape index: {0}]
  %s4 = inlined_call_operand.hbm [shape: bf16[2,4,8,8], index: 4, kind: output, shape index: {1}]
  %5 = xla_tuple %s3, %s4
  %s6 = sld [smem:[#allocation0]]
  $region61: #{tpu_custom_call.1} parent=0
    _
  %s8 = ssub.s32 1, %s6
  %s9 = scalar_select 0, %s8, %s6
  $region1: #{tpu_custom_call.1} parent=0
    #allocation2 [shape = 'u8[4096]{0}', space=vmem, size = 0x1000, scoped, tag = 'input window, operand 0']
    #allocation3 [shape = 's32[2]{0}', space=sflag, size = 0x8, scoped, tag = 'scoped memory for tpu_custom_call.1']
    #allocation4 [shape = 's32[2]{0}', space=sflag, size = 0x8, scoped, tag = 'scoped memory for tpu_custom_call.1']
    #allocation5 [shape = 'u8[8192]{0}', space=vmem, size = 0x2000, scoped, tag = 'input window, operand 1, single buffered']
    #allocation6 [shape = 's32[1]{0}', space=sflag, size = 0x4, scoped, tag = 'scoped memory for tpu_custom_call.1']
    #allocation7 [shape = 'u8[16384]{0}', space=vmem, size = 0x4000, scoped, tag = 'output window, operand 0']
    #allocation8 [shape = 'u8[16384]{0}', space=vmem, size = 0x4000, scoped, tag = 'output window, operand 1']
    #allocation9 [shape = 's32[2]{0}', space=sflag, size = 0x8, scoped, tag = 'scoped memory for tpu_custom_call.1']
    %10 = vsyncpa [#allocation3], 0
    %s11 = scalar_lea.sflag [#allocation3], 1
    %12 = vsyncpa %s11, 0
    %13 = vsyncpa [#allocation6], 0
    %14 = vsyncpa [#allocation4], 0
    %s15 = scalar_lea.sflag [#allocation4], 1
    %16 = vsyncpa %s15, 0
    %17 = vsyncpa [#allocation9], 0
    %s18 = scalar_lea.sflag [#allocation9], 1
    %19 = vsyncpa %s18, 0
    loop: start=0, step=1, limit=4
    $region2: #{tpu_custom_call.1} parent=1 // loop_pre_header
      _
    $region3: #{tpu_custom_call.1} parent=1 // loop_header
      %s21 = sphi 0, %s25
      %p22 = scmp.ge.s32.totalorder %s21, 4
      %s28 = sphi 0, %s40
      %s29 = sphi 0, %s36
      %s30 = sphi 0, %s28
      %s31 = sphi 0, %s29
      %s32 = sphi 0, %s30
      %s33 = sphi 0, %s31
      %s45 = sphi 0, %s47
      %s48 = sphi 0, %s45
      %s49 = sphi 0, %s48
      %s65 = sphi 0, %s49
      %s69 = sphi 0, %s69
      %s71 = sphi 0, %s69
      %s72 = sphi 0, %s71
      %s86 = sphi 0, %s72
      %s90 = sphi 0, %s90
      %s92 = sphi 0, %s90
      %s93 = sphi 0, %s92
      %s107 = sphi 0, %s93
      %s115 = sphi 0, %s117
      %s118 = sphi 0, %s115
      %s119 = sphi 0, %s118
      %s135 = sphi 0, %s119
      %s143 = sphi 0, %s145
      %s146 = sphi 0, %s143
      %s147 = sphi 0, %s146
      %s163 = sphi 0, %s147
    $region4: #{tpu_custom_call.1} parent=1 // loop_header_branch
      %24 = sbr.rel (%p22) target = $region8
    $region5: #{tpu_custom_call.1} parent=1 // loop_body
      %s26 = ssub.s32 %s21, 1
      %s27 = ssub.s32 %s21, 2
      %s34 = sadd.s32 1, %s29
      %p35 = scmp.ge.s32.totalorder %s34, 1
      %s36 = scalar_select %p35, 0, %s34
      %s37 = sadd.s32 1, %s28
      %s38 = scalar_select %p35, %s37, %s28
      %p39 = scmp.ge.s32.totalorder %s38, 2
      %s40 = scalar_select %p39, 0, %s38
      %s41 = ssub.s32 %s28, %s40
      %s42 = ssub.s32 %s29, %s36
      %s43 = sor.u32 %s41, %s42
      %p44 = scmp.eq.s32.totalorder %s43, 0
      %s46 = sadd.s32 %s45, 1
      %s47 = scalar_select %p44, %s45, %s46
      %p50 = pneg %p44
      %p51 = scmp.eq.s32.totalorder %s21, 1
      %p52 = por %p50, %p51
      %p53 = scmp.ne.s32.totalorder %s45, %s48
      %p54 = scmp.eq.s32.totalorder %s21, 0
      %p55 = por %p53, %p54
      %p56 = scmp.ne.s32.totalorder %s45, %s48
      %p57 = scmp.eq.s32.totalorder %s26, 1
      %p58 = por %p56, %p57
      %p59 = scmp.ne.s32.totalorder %s48, %s49
      %p60 = scmp.eq.s32.totalorder %s26, 0
      %p61 = por %p59, %p60
      %p62 = scmp.ne.s32.totalorder %s48, %s49
      %p63 = scmp.eq.s32.totalorder %s27, 1
      %p64 = por %p62, %p63
      %p66 = scmp.ne.s32.totalorder %s49, %s65
      %p67 = scmp.eq.s32.totalorder %s27, 0
      %p68 = por %p66, %p67
      %s70 = sadd.s32 %s69, 1
      %p73 = scmp.eq.s32.totalorder %s21, 1
      %p74 = scmp.ne.s32.totalorder %s69, %s71
      %p75 = scmp.eq.s32.totalorder %s21, 0
      %p76 = por %p74, %p75
      %p77 = scmp.ne.s32.totalorder %s69, %s71
      %p78 = scmp.eq.s32.totalorder %s26, 1
      %p79 = por %p77, %p78
      %p80 = scmp.ne.s32.totalorder %s71, %s72
      %p81 = scmp.eq.s32.totalorder %s26, 0
      %p82 = por %p80, %p81
      %p83 = scmp.ne.s32.totalorder %s71, %s72
      %p84 = scmp.eq.s32.totalorder %s27, 1
      %p85 = por %p83, %p84
      %p87 = scmp.ne.s32.totalorder %s72, %s86
      %p88 = scmp.eq.s32.totalorder %s27, 0
      %p89 = por %p87, %p88
      %s91 = sadd.s32 %s90, 1
      %p94 = scmp.eq.s32.totalorder %s21, 1
      %p95 = scmp.ne.s32.totalorder %s90, %s92
      %p96 = scmp.eq.s32.totalorder %s21, 0
      %p97 = por %p95, %p96
      %p98 = scmp.ne.s32.totalorder %s90, %s92
      %p99 = scmp.eq.s32.totalorder %s26, 1
      %p100 = por %p98, %p99
      %p101 = scmp.ne.s32.totalorder %s92, %s93
      %p102 = scmp.eq.s32.totalorder %s26, 0
      %p103 = por %p101, %p102
      %p104 = scmp.ne.s32.totalorder %s92, %s93
      %p105 = scmp.eq.s32.totalorder %s27, 1
      %p106 = por %p104, %p105
      %p108 = scmp.ne.s32.totalorder %s93, %s107
      %p109 = scmp.eq.s32.totalorder %s27, 0
      %p110 = por %p108, %p109
      %s111 = ssub.s32 %s28, %s40
      %s112 = ssub.s32 %s29, %s36
      %s113 = sor.u32 %s111, %s112
      %p114 = scmp.eq.s32.totalorder %s113, 0
      %s116 = sadd.s32 %s115, 1
      %s117 = scalar_select %p114, %s115, %s116
      %p120 = pneg %p114
      %p121 = scmp.eq.s32.totalorder %s21, 1
      %p122 = por %p120, %p121
      %p123 = scmp.ne.s32.totalorder %s115, %s118
      %p124 = scmp.eq.s32.totalorder %s21, 0
      %p125 = por %p123, %p124
      %p126 = scmp.ne.s32.totalorder %s115, %s118
      %p127 = scmp.eq.s32.totalorder %s26, 1
      %p128 = por %p126, %p127
      %p129 = scmp.ne.s32.totalorder %s118, %s119
      %p130 = scmp.eq.s32.totalorder %s26, 0
      %p131 = por %p129, %p130
      %p132 = scmp.ne.s32.totalorder %s118, %s119
      %p133 = scmp.eq.s32.totalorder %s27, 1
      %p134 = por %p132, %p133
      %p136 = scmp.ne.s32.totalorder %s119, %s135
      %p137 = scmp.eq.s32.totalorder %s27, 0
      %p138 = por %p136, %p137
      %s139 = ssub.s32 %s28, %s40
      %s140 = ssub.s32 %s29, %s36
      %s141 = sor.u32 %s139, %s140
      %p142 = scmp.eq.s32.totalorder %s141, 0
      %s144 = sadd.s32 %s143, 1
      %s145 = scalar_select %p142, %s143, %s144
      %p148 = pneg %p142
      %p149 = scmp.eq.s32.totalorder %s21, 1
      %p150 = por %p148, %p149
      %p151 = scmp.ne.s32.totalorder %s143, %s146
      %p152 = scmp.eq.s32.totalorder %s21, 0
      %p153 = por %p151, %p152
      %p154 = scmp.ne.s32.totalorder %s143, %s146
      %p155 = scmp.eq.s32.totalorder %s26, 1
      %p156 = por %p154, %p155
      %p157 = scmp.ne.s32.totalorder %s146, %s147
      %p158 = scmp.eq.s32.totalorder %s26, 0
      %p159 = por %p157, %p158
      %p160 = scmp.ne.s32.totalorder %s146, %s147
      %p161 = scmp.eq.s32.totalorder %s27, 1
      %p162 = por %p160, %p161
      %p164 = scmp.ne.s32.totalorder %s147, %s163
      %p165 = scmp.eq.s32.totalorder %s27, 0
      %p166 = por %p164, %p165
      %p167 = scmp.le.s32.totalorder 1, %s21
      %p168 = scmp.lt.s32.totalorder %s21, 3
      %p169 = pnand %p167, %p168
      %p170 = pneg %p169
      // Predicated region
      $region9: #{tpu_custom_call.1} parent=5 // pred_check
        _
      $region10: #{tpu_custom_call.1} parent=5 // pred_check_branch
        %172 = sbr.rel (%p169) target = $region12
      $region11: #{tpu_custom_call.1} parent=5 // pred_region
        %s173 = ssub.s32 %s21, 1
        // Predicated region
        $region13: #{tpu_custom_call.1} parent=11 // pred_check
          %p174 = pneg %p82
        $region14: #{tpu_custom_call.1} parent=11 // pred_check_branch
          %176 = sbr.rel (%p174) target = $region16
        $region15: #{tpu_custom_call.1} parent=11 // pred_region
          %178 = vsyncadd [#allocation6], 0
          %s179 = sshll.u32 %s1, 4
          %s180 = int_to_ptr.hbm [resolvable:$true] %s179
          %s181 = sshll.u32 [#allocation5], 4
          %s182 = int_to_ptr.vmem [resolvable:$true] %s181
          %187 = dma.hbm_to_vmem [thread:$0]  %s180, 256, %s182, [#allocation6], 64, 64, 4
        $region16: #{tpu_custom_call.1} parent=11 // pred_fallthru
          _
        // Predicated region
        $region17: #{tpu_custom_call.1} parent=11 // pred_check
          %p188 = pneg %p103
        $region18: #{tpu_custom_call.1} parent=11 // pred_check_branch
          %190 = sbr.rel (%p188) target = $region20
        $region19: #{tpu_custom_call.1} parent=11 // pred_region
          _
        $region20: #{tpu_custom_call.1} parent=11 // pred_fallthru
          _
      $region12: #{tpu_custom_call.1} parent=5 // pred_fallthru
        _
      %p191 = scmp.lt.s32.totalorder %s21, 2
      // Predicated region
      $region21: #{tpu_custom_call.1} parent=5 // pred_check
        %p192 = pneg %p191
      $region22: #{tpu_custom_call.1} parent=5 // pred_check_branch
        %194 = sbr.rel (%p192) target = $region24
      $region23: #{tpu_custom_call.1} parent=5 // pred_region
        // Predicated region
        $region25: #{tpu_custom_call.1} parent=23 // pred_check
          %p195 = pneg %p55
        $region26: #{tpu_custom_call.1} parent=23 // pred_check_branch
          %197 = sbr.rel (%p195) target = $region28
        $region27: #{tpu_custom_call.1} parent=23 // pred_region
          %s198 = sand.u32 %s45, 1
          %s199 = scalar_lea.sflag [#allocation3], %s198
          %s200 = sand.u32 %s45, 1
          %s201 = smul.addr %s200, 4
          %s202 = scalar_lea.vmem [#allocation2], %s201
          %204 = vsyncadd %s199, 0
          %s205 = sadd.s32 %s29, %s28
          %s206 = smul.addr %s205, 4
          %s207 = scalar_lea.hbm %s0, %s206
          %s209 = sshll.u32 %s207, 4
          %s210 = int_to_ptr.hbm [resolvable:$true] %s209
          %s211 = sshll.u32 %s202, 4
          %s212 = int_to_ptr.vmem [resolvable:$true] %s211
          %214 = dma.hbm_to_vmem [thread:$0]  %s210, 64, %s212, %s199
        $region28: #{tpu_custom_call.1} parent=23 // pred_fallthru
          _
      $region24: #{tpu_custom_call.1} parent=5 // pred_fallthru
        _
      %p215 = scmp.le.s32.totalorder 1, %s21
      %p216 = scmp.lt.s32.totalorder %s21, 3
      %p217 = pnand %p215, %p216
      %p218 = pneg %p217
      // Predicated region
      $region29: #{tpu_custom_call.1} parent=5 // pred_check
        _
      $region30: #{tpu_custom_call.1} parent=5 // pred_check_branch
        %220 = sbr.rel (%p217) target = $region32
      $region31: #{tpu_custom_call.1} parent=5 // pred_region
        %s221 = ssub.s32 %s21, 1
        %s222 = sand.u32 %s48, 1
        %s223 = scalar_lea.sflag [#allocation3], %s222
        %s224 = sand.u32 %s48, 1
        %s225 = smul.addr %s224, 4
        %s226 = scalar_lea.vmem [#allocation2], %s225
        // Predicated region
        $region33: #{tpu_custom_call.1} parent=31 // pred_check
          %p227 = pneg %p61
        $region34: #{tpu_custom_call.1} parent=31 // pred_check_branch
          %229 = sbr.rel (%p227) target = $region36
        $region35: #{tpu_custom_call.1} parent=31 // pred_region
          %231 = dma.done %s223, 64
        $region36: #{tpu_custom_call.1} parent=31 // pred_fallthru
          _
        // Predicated region
        $region37: #{tpu_custom_call.1} parent=31 // pred_check
          %p232 = pneg %p82
        $region38: #{tpu_custom_call.1} parent=31 // pred_check_branch
          %234 = sbr.rel (%p232) target = $region40
        $region39: #{tpu_custom_call.1} parent=31 // pred_region
          %236 = dma.done [#allocation6], 256
        $region40: #{tpu_custom_call.1} parent=31 // pred_fallthru
          _
        %s237 = sand.u32 %s48, 1
        %s238 = scalar_lea.sflag [#allocation3], %s237
        %s239 = sand.u32 %s48, 1
        %s240 = smul.addr %s239, 4
        %s241 = scalar_lea.vmem [#allocation2], %s240
        %p242 = pneg %p61
        %p243 = pneg %p58
        %p244 = pneg %p82
        %p245 = pneg %p79
        %p246 = pneg %p103
        %p247 = pneg %p100
        %p248 = pneg %p131
        %p249 = pneg %p128
        %s250 = sand.u32 %s118, 1
        %s251 = scalar_lea.sflag [#allocation4], %s250
        %s252 = sand.u32 %s118, 1
        %s253 = smul.addr %s252, 16
        %s254 = scalar_lea.vmem [#allocation7], %s253
        %p255 = pneg %p159
        %p256 = pneg %p156
        %s257 = sand.u32 %s146, 1
        %s258 = scalar_lea.sflag [#allocation9], %s257
        %s259 = sand.u32 %s146, 1
        %s260 = smul.addr %s259, 16
        %s261 = scalar_lea.vmem [#allocation8], %s260
        %v263 = vld [vmem:[%s226] sm:$0xf]
        %v264 = vld [vmem:[#allocation5] sm:$0xf]
        %v265 = vld [vmem:[#allocation5 + $0x4] sm:$0xf]
        %v266 = vld [vmem:[#allocation5 + $0x8] sm:$0xf]
        %v267 = vld [vmem:[#allocation5 + $0xc] sm:$0xf]
        %v268 = vld [vmem:[%s2] sm:$0x1]
        %v270 = vperm.slane %v268, 0
        %v276 = vunpack.c.l.b16 %v264
        %v277 = vunpack.c.l.b16 %v265
        %v278 = vunpack.c.l.b16 %v266
        %v279 = vunpack.c.l.b16 %v267
        %v280 = vpack.c.b16 %v277, %v276
        %v281 = vpack.c.b16 %v279, %v278
        %vm284 = vcmask 261120
        %v286 = vsel %vm284, %v263, 0
        %288 = vmatpush.bf16.msra.mxu0 0
        %289 = vmatpush.bf16.msra.mxu0 0
        %290 = vmatpush.bf16.msra.mxu0 0
        %291 = vmatpush.bf16.msra.mxu0 0
        %292 = vmatpush.bf16.msra.mxu0 0
        %293 = vmatpush.bf16.msra.mxu0 0
        %294 = vmatpush.bf16.msra.mxu0 %v281
        %295 = vmatpush.bf16.msra.mxu0 %v280
        %296 = vmatmul.bf16.gmra.mxu0 %v286
        %v297 = vpop.f32.mrf.mxu0
        %v298 = vadd.f32 %v270, %v297
        %v299 = vpop.f32.mrf.mxu0
        %300 = vdwg.mxu0
        %v301 = vpack.c.bf16 %v298, %v298
        %303 = vrot.lane.b32.xlu0 %v301, 120
        %v304 = vpop.permute.xlu0 %303
        %305 = vrot.lane.b32.xlu0 %v301, 112
        %v306 = vpop.permute.xlu0 %305
        %307 = vrot.lane.b32.xlu0 %v301, 104
        %v308 = vpop.permute.xlu0 %307
        %v311 = vpack.i.b16 %v304, %v301
        %v312 = vshrl.u32 %v301, 16
        %v313 = vshrl.u32 %v304, 16
        %v314 = vpack.i.b16 %v313, %v312
        %v317 = vpack.i.b16 %v308, %v306
        %v318 = vshrl.u32 %v306, 16
        %v319 = vshrl.u32 %v308, 16
        %v320 = vpack.i.b16 %v319, %v318
        %v323 = vunpack.c.l.s4 1983009808
        %v324 = vunpack.c.0.s8 %v323
        %v325 = vperm.slane %v311, %v324
        %v328 = vunpack.c.l.s4 1983009808
        %v329 = vunpack.c.0.s8 %v328
        %v330 = vperm.slane %v317, %v329
        %v331 = vrot.slane %v330, 4
        %vm332 = vcmask 1047556
        %v333 = vsel %vm332, %v331, %v325
        %v334 = vrot.slane %v325, 4
        %v335 = vsel %vm332, %v330, %v334
        %v337 = vunpack.c.l.s4 1934713408
        %v338 = vunpack.c.0.s8 %v337
        %v339 = vperm.slane %v333, %v338
        %v341 = vunpack.c.l.s4 1934713408
        %v342 = vunpack.c.0.s8 %v341
        %v343 = vperm.slane %v335, %v342
        %v344 = vrot.slane %v339, 4
        %v345 = vsel %vm332, 0, %v344
        %v346 = vrot.slane %v343, 4
        %v347 = vsel %vm332, 0, %v346
        %v350 = vunpack.c.l.s4 1983009808
        %v351 = vunpack.c.0.s8 %v350
        %v352 = vperm.slane %v314, %v351
        %v355 = vunpack.c.l.s4 1983009808
        %v356 = vunpack.c.0.s8 %v355
        %v357 = vperm.slane %v320, %v356
        %v358 = vrot.slane %v357, 4
        %v359 = vsel %vm332, %v358, %v352
        %v360 = vrot.slane %v352, 4
        %v361 = vsel %vm332, %v357, %v360
        %v363 = vunpack.c.l.s4 1934713408
        %v364 = vunpack.c.0.s8 %v363
        %v365 = vperm.slane %v359, %v364
        %v367 = vunpack.c.l.s4 1934713408
        %v368 = vunpack.c.0.s8 %v367
        %v369 = vperm.slane %v361, %v368
        %v370 = vrot.slane %v365, 4
        %v371 = vsel %vm332, 0, %v370
        %v372 = vrot.slane %v369, 4
        %v373 = vsel %vm332, 0, %v372
        %v374 = vsel %vm332, %v346, %v339
        %v376 = vunpack.c.l.s4 1983009808
        %v377 = vunpack.c.0.s8 %v376
        %v378 = vperm.slane %v374, %v377
        %v379 = vrot.slane %v347, 4
        %v380 = vsel %vm332, %v379, %v345
        %v382 = vunpack.c.l.s4 1983009808
        %v383 = vunpack.c.0.s8 %v382
        %v384 = vperm.slane %v380, %v383
        %v385 = vrot.slane %v384, 4
        %v386 = vsel %vm332, %v385, %v378
        %v388 = vunpack.c.l.s4 1934713408
        %v389 = vunpack.c.0.s8 %v388
        %v390 = vperm.slane %v386, %v389
        %v391 = vrot.slane %v390, 4
        %v392 = vsel %vm332, 0, %v391
        %v393 = vsel %vm332, %v372, %v365
        %v395 = vunpack.c.l.s4 1983009808
        %v396 = vunpack.c.0.s8 %v395
        %v397 = vperm.slane %v393, %v396
        %v398 = vrot.slane %v373, 4
        %v399 = vsel %vm332, %v398, %v371
        %v401 = vunpack.c.l.s4 1983009808
        %v402 = vunpack.c.0.s8 %v401
        %v403 = vperm.slane %v399, %v402
        %v404 = vrot.slane %v403, 4
        %v405 = vsel %vm332, %v404, %v397
        %v407 = vunpack.c.l.s4 1934713408
        %v408 = vunpack.c.0.s8 %v407
        %v409 = vperm.slane %v405, %v408
        %v410 = vrot.slane %v409, 4
        %v411 = vsel %vm332, 0, %v410
        %v414 = vpack.i.b16 %v409, %v390
        %v416 = vshrl.u32 %v390, 16
        %v417 = vshrl.u32 %v409, 16
        %v418 = vpack.i.b16 %v417, %v416
        %v422 = vpack.i.b16 %v411, %v392
        %v424 = vshrl.u32 %v392, 16
        %v425 = vshrl.u32 %v411, 16
        %v426 = vpack.i.b16 %v425, %v424
        %vm428 = vcmask 60416
        %429 = vst.msk [vmem:[%s254] sm:$0xf] %vm428, %v414
        %430 = vst.msk [vmem:[%s254 + $0x4] sm:$0xf] %vm428, %v418
        %431 = vst.msk [vmem:[%s254 + $0x8] sm:$0xf] %vm428, %v422
        %432 = vst.msk [vmem:[%s254 + $0xc] sm:$0xf] %vm428, %v426
        %433 = vrot.lane.b32.xlu0 %v301, 96
        %v434 = vpop.permute.xlu0 %433
        %435 = vrot.lane.b32.xlu0 %v304, 96
        %v436 = vpop.permute.xlu0 %435
        %437 = vrot.lane.b32.xlu0 %v306, 96
        %v438 = vpop.permute.xlu0 %437
        %439 = vrot.lane.b32.xlu0 %v308, 96
        %v440 = vpop.permute.xlu0 %439
        %v443 = vpack.i.b16 %v436, %v434
        %v444 = vshrl.u32 %v434, 16
        %v445 = vshrl.u32 %v436, 16
        %v446 = vpack.i.b16 %v445, %v444
        %v449 = vpack.i.b16 %v440, %v438
        %v450 = vshrl.u32 %v438, 16
        %v451 = vshrl.u32 %v440, 16
        %v452 = vpack.i.b16 %v451, %v450
        %v455 = vunpack.c.l.s4 1983009808
        %v456 = vunpack.c.0.s8 %v455
        %v457 = vperm.slane %v443, %v456
        %v460 = vunpack.c.l.s4 1983009808
        %v461 = vunpack.c.0.s8 %v460
        %v462 = vperm.slane %v449, %v461
        %v463 = vrot.slane %v462, 4
        %v464 = vsel %vm332, %v463, %v457
        %v465 = vrot.slane %v457, 4
        %v466 = vsel %vm332, %v462, %v465
        %v468 = vunpack.c.l.s4 1934713408
        %v469 = vunpack.c.0.s8 %v468
        %v470 = vperm.slane %v464, %v469
        %v472 = vunpack.c.l.s4 1934713408
        %v473 = vunpack.c.0.s8 %v472
        %v474 = vperm.slane %v466, %v473
        %v475 = vrot.slane %v470, 4
        %v476 = vsel %vm332, 0, %v475
        %v477 = vrot.slane %v474, 4
        %v478 = vsel %vm332, 0, %v477
        %v481 = vunpack.c.l.s4 1983009808
        %v482 = vunpack.c.0.s8 %v481
        %v483 = vperm.slane %v446, %v482
        %v486 = vunpack.c.l.s4 1983009808
        %v487 = vunpack.c.0.s8 %v486
        %v488 = vperm.slane %v452, %v487
        %v489 = vrot.slane %v488, 4
        %v490 = vsel %vm332, %v489, %v483
        %v491 = vrot.slane %v483, 4
        %v492 = vsel %vm332, %v488, %v491
        %v494 = vunpack.c.l.s4 1934713408
        %v495 = vunpack.c.0.s8 %v494
        %v496 = vperm.slane %v490, %v495
        %v498 = vunpack.c.l.s4 1934713408
        %v499 = vunpack.c.0.s8 %v498
        %v500 = vperm.slane %v492, %v499
        %v501 = vrot.slane %v496, 4
        %v502 = vsel %vm332, 0, %v501
        %v503 = vrot.slane %v500, 4
        %v504 = vsel %vm332, 0, %v503
        %v505 = vsel %vm332, %v477, %v470
        %v507 = vunpack.c.l.s4 1983009808
        %v508 = vunpack.c.0.s8 %v507
        %v509 = vperm.slane %v505, %v508
        %v510 = vrot.slane %v478, 4
        %v511 = vsel %vm332, %v510, %v476
        %v513 = vunpack.c.l.s4 1983009808
        %v514 = vunpack.c.0.s8 %v513
        %v515 = vperm.slane %v511, %v514
        %v516 = vrot.slane %v515, 4
        %v517 = vsel %vm332, %v516, %v509
        %v519 = vunpack.c.l.s4 1934713408
        %v520 = vunpack.c.0.s8 %v519
        %v521 = vperm.slane %v517, %v520
        %v522 = vrot.slane %v521, 4
        %v523 = vsel %vm332, 0, %v522
        %v524 = vsel %vm332, %v503, %v496
        %v526 = vunpack.c.l.s4 1983009808
        %v527 = vunpack.c.0.s8 %v526
        %v528 = vperm.slane %v524, %v527
        %v529 = vrot.slane %v504, 4
        %v530 = vsel %vm332, %v529, %v502
        %v532 = vunpack.c.l.s4 1983009808
        %v533 = vunpack.c.0.s8 %v532
        %v534 = vperm.slane %v530, %v533
        %v535 = vrot.slane %v534, 4
        %v536 = vsel %vm332, %v535, %v528
        %v538 = vunpack.c.l.s4 1934713408
        %v539 = vunpack.c.0.s8 %v538
        %v540 = vperm.slane %v536, %v539
        %v541 = vrot.slane %v540, 4
        %v542 = vsel %vm332, 0, %v541
        %v545 = vpack.i.b16 %v540, %v521
        %v547 = vshrl.u32 %v521, 16
        %v548 = vshrl.u32 %v540, 16
        %v549 = vpack.i.b16 %v548, %v547
        %v553 = vpack.i.b16 %v542, %v523
        %v555 = vshrl.u32 %v523, 16
        %v556 = vshrl.u32 %v542, 16
        %v557 = vpack.i.b16 %v556, %v555
        %559 = vst.msk [vmem:[%s261] sm:$0xf] %vm428, %v545
        %560 = vst.msk [vmem:[%s261 + $0x4] sm:$0xf] %vm428, %v549
        %561 = vst.msk [vmem:[%s261 + $0x8] sm:$0xf] %vm428, %v553
        %562 = vst.msk [vmem:[%s261 + $0xc] sm:$0xf] %vm428, %v557
        %s563 = sand.u32 %s118, 1
        %s564 = scalar_lea.sflag [#allocation4], %s563
        %s565 = sand.u32 %s118, 1
        %s566 = smul.addr %s565, 16
        %s567 = scalar_lea.vmem [#allocation7], %s566
        %s568 = sand.u32 %s146, 1
        %s569 = scalar_lea.sflag [#allocation9], %s568
        %s570 = sand.u32 %s146, 1
        %s571 = smul.addr %s570, 16
        %s572 = scalar_lea.vmem [#allocation8], %s571
        // Predicated region
        $region41: #{tpu_custom_call.1} parent=31 // pred_check
          %p573 = pneg %p128
        $region42: #{tpu_custom_call.1} parent=31 // pred_check_branch
          %575 = sbr.rel (%p573) target = $region44
        $region43: #{tpu_custom_call.1} parent=31 // pred_region
          %577 = vsyncadd %s564, 0
          %s578 = smul.addr %s30, 4
          %s579 = sadd.s32 %s31, %s578
          %s580 = smul.addr %s579, 4
          %s581 = scalar_lea.hbm %s3, %s580
          %s582 = sshll.u32 %s567, 4
          %s583 = int_to_ptr.vmem [resolvable:$true] %s582
          %s584 = sshll.u32 %s581, 4
          %s585 = int_to_ptr.hbm [resolvable:$true] %s584
          %590 = dma.vmem_to_hbm [thread:$0]  %s583, 256, %s585, %s564, 64, 64, 4
        $region44: #{tpu_custom_call.1} parent=31 // pred_fallthru
          _
        // Predicated region
        $region45: #{tpu_custom_call.1} parent=31 // pred_check
          %p591 = pneg %p156
        $region46: #{tpu_custom_call.1} parent=31 // pred_check_branch
          %593 = sbr.rel (%p591) target = $region48
        $region47: #{tpu_custom_call.1} parent=31 // pred_region
          %595 = vsyncadd %s569, 0
          %s596 = smul.addr %s30, 4
          %s597 = sadd.s32 %s31, %s596
          %s598 = smul.addr %s597, 4
          %s599 = scalar_lea.hbm %s4, %s598
          %s600 = sshll.u32 %s572, 4
          %s601 = int_to_ptr.vmem [resolvable:$true] %s600
          %s602 = sshll.u32 %s599, 4
          %s603 = int_to_ptr.hbm [resolvable:$true] %s602
          %608 = dma.vmem_to_hbm [thread:$0]  %s601, 256, %s603, %s569, 64, 64, 4
        $region48: #{tpu_custom_call.1} parent=31 // pred_fallthru
          _
      $region32: #{tpu_custom_call.1} parent=5 // pred_fallthru
        _
      %p609 = scmp.le.s32.totalorder 2, %s21
      // Predicated region
      $region49: #{tpu_custom_call.1} parent=5 // pred_check
        %p610 = pneg %p609
      $region50: #{tpu_custom_call.1} parent=5 // pred_check_branch
        %612 = sbr.rel (%p610) target = $region52
      $region51: #{tpu_custom_call.1} parent=5 // pred_region
        %s613 = ssub.s32 %s21, 2
        // Predicated region
        $region53: #{tpu_custom_call.1} parent=51 // pred_check
          %p614 = pneg %p134
        $region54: #{tpu_custom_call.1} parent=51 // pred_check_branch
          %616 = sbr.rel (%p614) target = $region56
        $region55: #{tpu_custom_call.1} parent=51 // pred_region
          %s617 = sand.u32 %s119, 1
          %s618 = scalar_lea.sflag [#allocation4], %s617
          %s619 = sand.u32 %s119, 1
          %s620 = smul.addr %s619, 16
          %s621 = scalar_lea.vmem [#allocation7], %s620
          %623 = dma.done %s618, 256
        $region56: #{tpu_custom_call.1} parent=51 // pred_fallthru
          _
        // Predicated region
        $region57: #{tpu_custom_call.1} parent=51 // pred_check
          %p624 = pneg %p162
        $region58: #{tpu_custom_call.1} parent=51 // pred_check_branch
          %626 = sbr.rel (%p624) target = $region60
        $region59: #{tpu_custom_call.1} parent=51 // pred_region
          %s627 = sand.u32 %s147, 1
          %s628 = scalar_lea.sflag [#allocation9], %s627
          %s629 = sand.u32 %s147, 1
          %s630 = smul.addr %s629, 16
          %s631 = scalar_lea.vmem [#allocation8], %s630
          %633 = dma.done %s628, 256
        $region60: #{tpu_custom_call.1} parent=51 // pred_fallthru
          _
      $region52: #{tpu_custom_call.1} parent=5 // pred_fallthru
        _
    $region6: #{tpu_custom_call.1} parent=1 // loop_footer
      %s25 = sadd.s32 1, %s21
    $region7: #{tpu_custom_call.1} parent=1 // loop_footer_branch
      %20 = sbr.rel target = $region3
    $region8: #{tpu_custom_call.1} parent=1 // loop_exit
      _
    %634 = vsyncpa [#allocation3], 1
    %s635 = scalar_lea.sflag [#allocation3], 1
    %636 = vsyncpa %s635, 1
    %637 = vsyncpa [#allocation6], 1
    %638 = vsyncpa [#allocation4], 1
    %s639 = scalar_lea.sflag [#allocation4], 1
    %640 = vsyncpa %s639, 1
    %641 = vsyncpa [#allocation9], 1
    %s642 = scalar_lea.sflag [#allocation9], 1
    %643 = vsyncpa %s642, 1

</llo_original>
